<compile_context>
chip_gen: v6e
topology: v6e:2x2x1
jax: 0.10.0
libtpu: 0.0.40
codegen_flags: <defaults>
</compile_context>

<pallas_src>
import functools

import jax
import jax.numpy as jnp
from jax import lax
from jax.experimental import pallas as pl
from jax.experimental.pallas import tpu as pltpu

_TARGET_TILE_BYTES = 2 * 1024 * 1024  # ~2 MiB per input tile (f32)
_VMEM_LIMIT_BYTES = 32 * 1024 * 1024  # safe on v5e/v6e/v7x


def _choose_tile_rows(num_rows, n, target_bytes=_TARGET_TILE_BYTES):
    """Pick a row-tile (multiple of 8) so one f32 tile is ~target_bytes."""
    rows = (target_bytes // (4 * n)) // 8 * 8
    rows = max(8, rows)
    return int(min(rows, num_rows))


def _patr_partials_kernel(tile_rows, num_rows, fx_ref, y_ref,
                          lp_ref, ln_ref, yp_ref):
    """One grid step: reduce a (tile_rows, N) tile to (1, N) partial sums.

    Outputs (per block, lane-dense):
      lp_ref: sum over valid rows of (y==+1) * hinge
      ln_ref: sum over valid rows of (y==-1) * hinge
      yp_ref: count over valid rows of (y==+1)
    """
    fx = fx_ref[...].astype(jnp.float32)
    y = y_ref[...].astype(jnp.float32)

    # Mask rows that fall past the end of the (possibly ragged) batch; the
    # last grid block may read garbage there.
    row0 = pl.program_id(0) * tile_rows
    rows = lax.broadcasted_iota(jnp.int32, (tile_rows, 1), 0) + row0
    valid = rows < num_rows                                  # (tile_rows, 1)

    hinge = jnp.maximum(1.0 - y * fx, 0.0)                   # lh(fx, y)
    is_pos = jnp.logical_and(valid, y == 1.0)
    is_neg = jnp.logical_and(valid, y == -1.0)

    # Sublane-axis reductions only (VPU adds + cheap intra-vreg fold); the
    # cross-lane collapse to scalars happens in the wrapper epilogue.
    lp_ref[...] = jnp.sum(jnp.where(is_pos, hinge, 0.0), axis=0, keepdims=True)
    ln_ref[...] = jnp.sum(jnp.where(is_neg, hinge, 0.0), axis=0, keepdims=True)
    yp_ref[...] = jnp.sum(jnp.where(is_pos, 1.0, 0.0), axis=0, keepdims=True)


def patr_loss(y_pred, y, l_param, a, *, tile_rows=None):
    """Pallas implementation of PatRLoss.forward(y_pred, y)."""
    denom = y.shape[0]  # len(y) in the PyTorch module

    # Normalize to a 2-D (rows, lanes) view.
    if y_pred.ndim == 1:
        fx2 = y_pred.reshape(1, -1)
        y2 = y.reshape(1, -1)
        # TODO(synk): for extremely long 1-D inputs, also tile the lane axis.
    else:
        fx2 = y_pred.reshape(y_pred.shape[0], -1)
        y2 = y.reshape(y.shape[0], -1)

    B2, N = y2.shape

    # Pad rows to a multiple of 8 (sublane tiling). Padded labels are 0, so
    # they match neither +1 nor -1 and contribute nothing.
    pad = (-B2) % 8
    if pad:
        fx2 = jnp.pad(fx2, ((0, pad), (0, 0)))
        y2 = jnp.pad(y2, ((0, pad), (0, 0)))
        B2 = B2 + pad

    if tile_rows is None:
        tile_rows = _choose_tile_rows(B2, N)
    else:
        tile_rows = max(8, int(tile_rows) // 8 * 8)
        tile_rows = min(tile_rows, B2)

    grid = (pl.cdiv(B2, tile_rows),)
    num_blocks = grid[0]

    kernel = functools.partial(_patr_partials_kernel, tile_rows, B2)

    part_shape = jax.ShapeDtypeStruct((num_blocks, 1, N), jnp.float32)
    in_spec = pl.BlockSpec((tile_rows, N), lambda i: (i, 0))
    out_spec = pl.BlockSpec((None, 1, N), lambda i: (i, 0, 0))

    lp_parts, ln_parts, yp_parts = pl.pallas_call(
        kernel,
        out_shape=(part_shape, part_shape, part_shape),
        grid=grid,
        in_specs=[in_spec, in_spec],
        out_specs=(out_spec, out_spec, out_spec),
        compiler_params=pltpu.CompilerParams(
            dimension_semantics=("parallel",),   # megacore-friendly on v7x
            vmem_limit_bytes=_VMEM_LIMIT_BYTES),
    )(fx2, y2)

    # Tiny epilogue in plain JAX: collapse partials and apply the formula.
    Lp = jnp.sum(lp_parts)
    Ln = jnp.sum(ln_parts)
    Yp = jnp.sum(yp_parts)
    l = l_param[0]
    a = jnp.float32(a)
    ratpg = a * Ln + (1.0 - a) * Lp - (1.0 - a) * Yp     # RatPg
    ratp = Lp + l * ratpg                                # RatPf + l*RatPg
    return ratp / jnp.float32(denom)                     # / len(y)


def patr_loss_ref(y_pred, y, l_param, a):
    """Pure-JAX reference matching the PyTorch module."""
    fx = y_pred.astype(jnp.float32)
    yf = y.astype(jnp.float32)
    hinge = jnp.maximum(1.0 - yf * fx, 0.0)
    Lp = jnp.sum((yf == 1.0).astype(jnp.float32) * hinge)
    Ln = jnp.sum((yf == -1.0).astype(jnp.float32) * hinge)
    Yp = jnp.sum((yf == 1.0).astype(jnp.float32))
    ratpg = a * Ln + (1.0 - a) * Lp - (1.0 - a) * Yp
    l = l_param[0]
    return (Lp + l * ratpg) / y.shape[0]


if __name__ == "__main__":
    key = jax.random.PRNGKey(0)
    k1, k2, k3, k4, k5, k6 = jax.random.split(key, 6)

    # deterministic parameter / hyperparameter init (matches __init__ defaults)
    a = 0.3
    l_param = jnp.array([0.1], dtype=jnp.float32)  # nn.Parameter([0.1])

    # --- test 1: tile-aligned 2-D inputs (single block) ---
    B, N = 32, 128
    y_pred = jax.random.normal(k1, (B, N), dtype=jnp.float32)
    y = jnp.where(jax.random.bernoulli(k2, 0.5, (B, N)), 1.0, -1.0).astype(
        jnp.float32)
    out = jax.block_until_ready(patr_loss(y_pred, y, l_param, a))
    ref = patr_loss_ref(y_pred, y, l_param, a)
    assert jnp.allclose(out, ref, rtol=1e-5, atol=1e-5), (out, ref)

    # --- test 2: multi-block grid with a masked (partial) last tile ---
    Bb, Nb = 40, 256
    yp2 = jax.random.normal(k3, (Bb, Nb), dtype=jnp.float32)
    yl2 = jnp.where(jax.random.bernoulli(k4, 0.5, (Bb, Nb)), 1.0, -1.0).astype(
        jnp.float32)
    out2 = jax.block_until_ready(patr_loss(yp2, yl2, l_param, a, tile_rows=16))
    ref2 = patr_loss_ref(yp2, yl2, l_param, a)
    assert jnp.allclose(out2, ref2, rtol=1e-5, atol=1e-5), (out2, ref2)

    # --- test 3: 1-D inputs (common shape for a binary PU-style loss) ---
    Bc = 48
    yp3 = jax.random.normal(k5, (Bc,), dtype=jnp.float32)
    yl3 = jnp.where(jax.random.bernoulli(k6, 0.5, (Bc,)), 1.0, -1.0).astype(
        jnp.float32)
    out3 = jax.block_until_ready(patr_loss(yp3, yl3, l_param, a))
    ref3 = patr_loss_ref(yp3, yl3, l_param, a)
    assert jnp.allclose(out3, ref3, rtol=1e-5, atol=1e-5), (out3, ref3)

    print("KERNEL_OK")
</pallas_src>

<mosaic_0001>
module attributes {stable_mosaic.version = 11 : i64} {
  func.func @_patr_partials_kernel(%arg0: i32, %arg1: memref<32x128xf32, #tpu.memory_space<vmem>>, %arg2: memref<32x128xf32, #tpu.memory_space<vmem>>, %arg3: memref<1x1x128xf32, #tpu.memory_space<vmem>>, %arg4: memref<1x1x128xf32, #tpu.memory_space<vmem>>, %arg5: memref<1x1x128xf32, #tpu.memory_space<vmem>>) attributes {dimension_semantics = [#tpu.dimension_semantics<parallel>], iteration_bounds = array<i64: 1>, scalar_prefetch = 0 : i64, scratch_operands = 0 : i64, tpu.core_type = #tpu.core_type<tc>, window_params = [{transform_indices = @transform_0, window_bounds = array<i64: 32, 128>}, {transform_indices = @transform_1, window_bounds = array<i64: 32, 128>}, {transform_indices = @transform_2, window_bounds = array<i64: 1, 1, 128>}, {transform_indices = @transform_3, window_bounds = array<i64: 1, 1, 128>}, {transform_indices = @transform_4, window_bounds = array<i64: 1, 1, 128>}]} {
    %c0 = arith.constant 0 : index
    %c0_0 = arith.constant 0 : index
    %0 = vector.load %arg1[%c0, %c0_0] : memref<32x128xf32, #tpu.memory_space<vmem>>, vector<32x128xf32>
    %c0_1 = arith.constant 0 : index
    %c0_2 = arith.constant 0 : index
    %1 = vector.load %arg2[%c0_1, %c0_2] : memref<32x128xf32, #tpu.memory_space<vmem>>, vector<32x128xf32>
    %c32_i32 = arith.constant 32 : i32
    %2 = arith.muli %arg0, %c32_i32 : i32
    %3 = tpu.iota {dimensions = array<i32: 0>} : vector<32x1xi32>
    %4 = vector.broadcast %2 : i32 to vector<32x1xi32>
    %5 = arith.addi %3, %4 : vector<32x1xi32>
    %c32_i32_3 = arith.constant 32 : i32
    %6 = vector.broadcast %c32_i32_3 : i32 to vector<32x1xi32>
    %7 = arith.cmpi slt, %5, %6 : vector<32x1xi32>
    %8 = arith.mulf %1, %0 : vector<32x128xf32>
    %cst = arith.constant 1.000000e+00 : f32
    %9 = vector.broadcast %cst : f32 to vector<32x128xf32>
    %10 = arith.subf %9, %8 : vector<32x128xf32>
    %cst_4 = arith.constant 0.000000e+00 : f32
    %11 = vector.broadcast %cst_4 : f32 to vector<32x128xf32>
    %12 = arith.maximumf %10, %11 : vector<32x128xf32>
    %cst_5 = arith.constant 1.000000e+00 : f32
    %13 = vector.broadcast %cst_5 : f32 to vector<32x128xf32>
    %14 = arith.cmpf oeq, %1, %13 : vector<32x128xf32>
    %15 = vector.broadcast %7 : vector<32x1xi1> to vector<32x128xi1>
    %16 = arith.andi %15, %14 : vector<32x128xi1>
    %cst_6 = arith.constant -1.000000e+00 : f32
    %17 = vector.broadcast %cst_6 : f32 to vector<32x128xf32>
    %18 = arith.cmpf oeq, %1, %17 : vector<32x128xf32>
    %19 = vector.broadcast %7 : vector<32x1xi1> to vector<32x128xi1>
    %20 = arith.andi %19, %18 : vector<32x128xi1>
    %cst_7 = arith.constant 0.000000e+00 : f32
    %21 = vector.broadcast %cst_7 : f32 to vector<32x128xf32>
    %22 = arith.select %16, %12, %21 : vector<32x128xi1>, vector<32x128xf32>
    %cst_8 = arith.constant dense<0.000000e+00> : vector<128xf32>
    %23 = vector.multi_reduction <add>, %22, %cst_8 [0] : vector<32x128xf32> to vector<128xf32>
    %24 = vector.shape_cast %23 : vector<128xf32> to vector<1x128xf32>
    %c0_9 = arith.constant 0 : index
    %c0_10 = arith.constant 0 : index
    %c0_11 = arith.constant 0 : index
    %25 = vector.load %arg3[%c0_9, %c0_10, %c0_11] : memref<1x1x128xf32, #tpu.memory_space<vmem>>, vector<1x1x128xf32>
    %26 = vector.shape_cast %25 : vector<1x1x128xf32> to vector<1x128xf32>
    %27 = vector.shape_cast %24 : vector<1x128xf32> to vector<1x1x128xf32>
    tpu.vector_store %arg3[%c0_9, %c0_10, %c0_11], %27 {strides = array<i32>} : memref<1x1x128xf32, #tpu.memory_space<vmem>>, vector<1x1x128xf32>,
    %cst_12 = arith.constant 0.000000e+00 : f32
    %28 = vector.broadcast %cst_12 : f32 to vector<32x128xf32>
    %29 = arith.select %20, %12, %28 : vector<32x128xi1>, vector<32x128xf32>
    %cst_13 = arith.constant dense<0.000000e+00> : vector<128xf32>
    %30 = vector.multi_reduction <add>, %29, %cst_13 [0] : vector<32x128xf32> to vector<128xf32>
    %31 = vector.shape_cast %30 : vector<128xf32> to vector<1x128xf32>
    %c0_14 = arith.constant 0 : index
    %c0_15 = arith.constant 0 : index
    %c0_16 = arith.constant 0 : index
    %32 = vector.load %arg4[%c0_14, %c0_15, %c0_16] : memref<1x1x128xf32, #tpu.memory_space<vmem>>, vector<1x1x128xf32>
    %33 = vector.shape_cast %32 : vector<1x1x128xf32> to vector<1x128xf32>
    %34 = vector.shape_cast %31 : vector<1x128xf32> to vector<1x1x128xf32>
    tpu.vector_store %arg4[%c0_14, %c0_15, %c0_16], %34 {strides = array<i32>} : memref<1x1x128xf32, #tpu.memory_space<vmem>>, vector<1x1x128xf32>,
    %cst_17 = arith.constant 1.000000e+00 : f32
    %cst_18 = arith.constant 0.000000e+00 : f32
    %35 = vector.broadcast %cst_17 : f32 to vector<32x128xf32>
    %36 = vector.broadcast %cst_18 : f32 to vector<32x128xf32>
    %37 = arith.select %16, %35, %36 : vector<32x128xi1>, vector<32x128xf32>
    %cst_19 = arith.constant dense<0.000000e+00> : vector<128xf32>
    %38 = vector.multi_reduction <add>, %37, %cst_19 [0] : vector<32x128xf32> to vector<128xf32>
    %39 = vector.shape_cast %38 : vector<128xf32> to vector<1x128xf32>
    %c0_20 = arith.constant 0 : index
    %c0_21 = arith.constant 0 : index
    %c0_22 = arith.constant 0 : index
    %40 = vector.load %arg5[%c0_20, %c0_21, %c0_22] : memref<1x1x128xf32, #tpu.memory_space<vmem>>, vector<1x1x128xf32>
    %41 = vector.shape_cast %40 : vector<1x1x128xf32> to vector<1x128xf32>
    %42 = vector.shape_cast %39 : vector<1x128xf32> to vector<1x1x128xf32>
    tpu.vector_store %arg5[%c0_20, %c0_21, %c0_22], %42 {strides = array<i32>} : memref<1x1x128xf32, #tpu.memory_space<vmem>>, vector<1x1x128xf32>,
    return
  }
  func.func @transform_0(%arg0: i32) -> (i32, i32) {
    %c0_i32 = arith.constant 0 : i32
    %c0_i32_0 = arith.constant 0 : i32
    return %arg0, %c0_i32 : i32, i32
  }
  func.func @transform_1(%arg0: i32) -> (i32, i32) {
    %c0_i32 = arith.constant 0 : i32
    %c0_i32_0 = arith.constant 0 : i32
    return %arg0, %c0_i32 : i32, i32
  }
  func.func @transform_2(%arg0: i32) -> (i32, i32, i32) {
    %c0_i32 = arith.constant 0 : i32
    %c0_i32_0 = arith.constant 0 : i32
    %c0_i32_1 = arith.constant 0 : i32
    return %arg0, %c0_i32, %c0_i32_0 : i32, i32, i32
  }
  func.func @transform_3(%arg0: i32) -> (i32, i32, i32) {
    %c0_i32 = arith.constant 0 : i32
    %c0_i32_0 = arith.constant 0 : i32
    %c0_i32_1 = arith.constant 0 : i32
    return %arg0, %c0_i32, %c0_i32_0 : i32, i32, i32
  }
  func.func @transform_4(%arg0: i32) -> (i32, i32, i32) {
    %c0_i32 = arith.constant 0 : i32
    %c0_i32_0 = arith.constant 0 : i32
    %c0_i32_1 = arith.constant 0 : i32
    return %arg0, %c0_i32, %c0_i32_0 : i32, i32, i32
  }
}

</mosaic_0001>

<llo_original>
// kernel: tpu_custom_call.1
$region0: #{tpu_custom_call.1}
  #allocation0 [shape = 'u32[]', space=smem, size = 0x4, offset = 0x4, fixed_abs, tag = 'smem constant byte address 0x4 - core index']
  #allocation1 [shape = 'u32[144,128]{1,0:T(1,128)}', space=vmem, size = 0x12000, scoped, tag = 'internal scratch']
  %s0 = inlined_call_operand.hbm [shape: f32[32,128], index: 0, kind: input, shape index: {}]
  %s1 = inlined_call_operand.hbm [shape: f32[32,128], index: 1, kind: input, shape index: {}]
  %s2 = inlined_call_operand.hbm [shape: f32[1,1,128], index: 2, kind: output, shape index: {0}]
  %s3 = inlined_call_operand.hbm [shape: f32[1,1,128], index: 3, kind: output, shape index: {1}]
  %s4 = inlined_call_operand.hbm [shape: f32[1,1,128], index: 4, kind: output, shape index: {2}]
  %5 = xla_tuple %s2, %s3, %s4
  %s6 = sld [smem:[#allocation0]]
  $region42: #{tpu_custom_call.1} parent=0
    _
  %s8 = ssub.s32 1, %s6
  %s9 = scalar_select 0, %s8, %s6
  $region1: #{tpu_custom_call.1} parent=0
    #allocation2 [shape = 'u8[16384]{0}', space=vmem, size = 0x4000, scoped, tag = 'input window, operand 0, single buffered']
    #allocation3 [shape = 's32[1]{0}', space=sflag, size = 0x4, scoped, tag = 'scoped memory for tpu_custom_call.1']
    #allocation4 [shape = 's32[1]{0}', space=sflag, size = 0x4, scoped, tag = 'scoped memory for tpu_custom_call.1']
    #allocation5 [shape = 'u8[16384]{0}', space=vmem, size = 0x4000, scoped, tag = 'input window, operand 1, single buffered']
    #allocation6 [shape = 's32[1]{0}', space=sflag, size = 0x4, scoped, tag = 'scoped memory for tpu_custom_call.1']
    #allocation7 [shape = 'u8[512]{0}', space=vmem, size = 0x400, scoped, tag = 'output window, operand 0, single buffered']
    #allocation8 [shape = 'u8[512]{0}', space=vmem, size = 0x400, scoped, tag = 'output window, operand 1, single buffered']
    #allocation9 [shape = 's32[1]{0}', space=sflag, size = 0x4, scoped, tag = 'scoped memory for tpu_custom_call.1']
    #allocation10 [shape = 'u8[512]{0}', space=vmem, size = 0x400, scoped, tag = 'output window, operand 2, single buffered']
    %10 = vsyncpa [#allocation3], 0
    %11 = vsyncpa [#allocation6], 0
    %12 = vsyncpa [#allocation4], 0
    %13 = vsyncpa [#allocation9], 0
    // Predicated region
    $region2: #{tpu_custom_call.1} parent=1 // pred_check
      _
    $region3: #{tpu_custom_call.1} parent=1 // pred_check_branch
      %15 = sbr.rel (0) target = $region5
    $region4: #{tpu_custom_call.1} parent=1 // pred_region
      %s17 = ssub.s32 512, 512
      %18 = vsyncadd [#allocation3], %s17
      %s19 = sshll.u32 [#allocation2], 4
      %s20 = int_to_ptr.vmem [resolvable:$true] %s19
      %25 = dma.hbm_to_vmem [thread:$0]  %s0, 512, %s20, [#allocation3], 128, 128, 8
    $region5: #{tpu_custom_call.1} parent=1 // pred_fallthru
      _
    // Predicated region
    $region6: #{tpu_custom_call.1} parent=1 // pred_check
      _
    $region7: #{tpu_custom_call.1} parent=1 // pred_check_branch
      %27 = sbr.rel (0) target = $region9
    $region8: #{tpu_custom_call.1} parent=1 // pred_region
      %s29 = ssub.s32 512, 512
      %30 = vsyncadd [#allocation6], %s29
      %s31 = sshll.u32 [#allocation5], 4
      %s32 = int_to_ptr.vmem [resolvable:$true] %s31
      %37 = dma.hbm_to_vmem [thread:$0]  %s1, 512, %s32, [#allocation6], 128, 128, 8
    $region9: #{tpu_custom_call.1} parent=1 // pred_fallthru
      _
    // Predicated region
    $region10: #{tpu_custom_call.1} parent=1 // pred_check
      _
    $region11: #{tpu_custom_call.1} parent=1 // pred_check_branch
      %39 = sbr.rel (0) target = $region13
    $region12: #{tpu_custom_call.1} parent=1 // pred_region
      %40 = dma.done [#allocation3], 512
    $region13: #{tpu_custom_call.1} parent=1 // pred_fallthru
      _
    // Predicated region
    $region14: #{tpu_custom_call.1} parent=1 // pred_check
      _
    $region15: #{tpu_custom_call.1} parent=1 // pred_check_branch
      %42 = sbr.rel (0) target = $region17
    $region16: #{tpu_custom_call.1} parent=1 // pred_region
      %43 = dma.done [#allocation6], 512
    $region17: #{tpu_custom_call.1} parent=1 // pred_fallthru
      _
    %v44 = vld [vmem:[#allocation2] sm:$0xff]
    %v45 = vld [vmem:[#allocation2 + $0x8] sm:$0xff]
    %v46 = vld [vmem:[#allocation2 + $0x10] sm:$0xff]
    %v47 = vld [vmem:[#allocation2 + $0x18] sm:$0xff]
    %v48 = vld [vmem:[#allocation5] sm:$0xff]
    %v49 = vld [vmem:[#allocation5 + $0x8] sm:$0xff]
    %v50 = vld [vmem:[#allocation5 + $0x10] sm:$0xff]
    %v51 = vld [vmem:[#allocation5 + $0x18] sm:$0xff]
    %s52 = smul.u32 0, 32
    %v53 = vlaneseq
    %v54 = vshrl.u32 %v53, 7
    %v55 = vadd.s32 %v54, 8
    %v56 = vadd.s32 %v54, 16
    %v57 = vadd.s32 %v54, 24
    %v58 = vstv %s52
    %v59 = vadd.s32 %v54, %v58
    %v60 = vadd.s32 %v55, %v58
    %v61 = vadd.s32 %v56, %v58
    %v62 = vadd.s32 %v57, %v58
    %vm63 = vcmp.lt.s32.totalorder %v59, 32
    %vm64 = vcmp.lt.s32.totalorder %v60, 32
    %vm65 = vcmp.lt.s32.totalorder %v61, 32
    %vm66 = vcmp.lt.s32.totalorder %v62, 32
    %v67 = vmul.f32 %v48, %v44
    %v68 = vmul.f32 %v49, %v45
    %v69 = vmul.f32 %v50, %v46
    %v70 = vmul.f32 %v51, %v47
    %v71 = vsub.f32 1.0, %v67
    %v72 = vsub.f32 1.0, %v68
    %v73 = vsub.f32 1.0, %v69
    %v74 = vsub.f32 1.0, %v70
    %v75 = vmax.f32 %v71, 0.0
    %v76 = vmax.f32 %v72, 0.0
    %v77 = vmax.f32 %v73, 0.0
    %v78 = vmax.f32 %v74, 0.0
    %vm79 = vcmp.eq.f32.partialorder %v48, 1.0
    %vm80 = vcmp.eq.f32.partialorder %v49, 1.0
    %vm81 = vcmp.eq.f32.partialorder %v50, 1.0
    %vm82 = vcmp.eq.f32.partialorder %v51, 1.0
    %v83 = vsel %vm63, 1, 0
    %v84 = vsel %vm64, 1, 0
    %v85 = vsel %vm65, 1, 0
    %v86 = vsel %vm66, 1, 0
    %vm87 = vcmp.eq.s32.totalorder %v83, 1
    %vm88 = vcmp.eq.s32.totalorder %v84, 1
    %vm89 = vcmp.eq.s32.totalorder %v85, 1
    %vm90 = vcmp.eq.s32.totalorder %v86, 1
    %vm91 = vmand %vm87, %vm79
    %vm92 = vmand %vm88, %vm80
    %vm93 = vmand %vm89, %vm81
    %vm94 = vmand %vm90, %vm82
    %vm95 = vcmp.eq.f32.partialorder %v48, -1.0
    %vm96 = vcmp.eq.f32.partialorder %v49, -1.0
    %vm97 = vcmp.eq.f32.partialorder %v50, -1.0
    %vm98 = vcmp.eq.f32.partialorder %v51, -1.0
    %vm99 = vmand %vm87, %vm95
    %vm100 = vmand %vm88, %vm96
    %vm101 = vmand %vm89, %vm97
    %vm102 = vmand %vm90, %vm98
    %v103 = vsel %vm91, %v75, 0.0
    %v104 = vsel %vm92, %v76, 0.0
    %v105 = vsel %vm93, %v77, 0.0
    %v106 = vsel %vm94, %v78, 0.0
    %v107 = vadd.f32 %v103, %v104
    %v108 = vadd.f32 %v107, %v105
    %v109 = vadd.f32 %v108, %v106
    %v110 = vrot.slane %v109, 4
    %v111 = vadd.f32 %v109, %v110
    %v112 = vrot.slane %v111, 2
    %v113 = vadd.f32 %v111, %v112
    %v114 = vrot.slane %v113, 1
    %v115 = vadd.f32 %v113, %v114
    %116 = vst [vmem:[#allocation7] sm:$0x1] %v115
    %v117 = vsel %vm99, %v75, 0.0
    %v118 = vsel %vm100, %v76, 0.0
    %v119 = vsel %vm101, %v77, 0.0
    %v120 = vsel %vm102, %v78, 0.0
    %v121 = vadd.f32 %v117, %v118
    %v122 = vadd.f32 %v121, %v119
    %v123 = vadd.f32 %v122, %v120
    %v124 = vrot.slane %v123, 4
    %v125 = vadd.f32 %v123, %v124
    %v126 = vrot.slane %v125, 2
    %v127 = vadd.f32 %v125, %v126
    %v128 = vrot.slane %v127, 1
    %v129 = vadd.f32 %v127, %v128
    %130 = vst [vmem:[#allocation8] sm:$0x1] %v129
    %v131 = vsel %vm91, 1.0, 0.0
    %v132 = vsel %vm92, 1.0, 0.0
    %v133 = vsel %vm93, 1.0, 0.0
    %v134 = vsel %vm94, 1.0, 0.0
    %v135 = vadd.f32 %v131, %v132
    %v136 = vadd.f32 %v135, %v133
    %v137 = vadd.f32 %v136, %v134
    %v138 = vrot.slane %v137, 4
    %v139 = vadd.f32 %v137, %v138
    %v140 = vrot.slane %v139, 2
    %v141 = vadd.f32 %v139, %v140
    %v142 = vrot.slane %v141, 1
    %v143 = vadd.f32 %v141, %v142
    %144 = vst [vmem:[#allocation10] sm:$0x1] %v143
    // Predicated region
    $region18: #{tpu_custom_call.1} parent=1 // pred_check
      _
    $region19: #{tpu_custom_call.1} parent=1 // pred_check_branch
      %146 = sbr.rel (0) target = $region21
    $region20: #{tpu_custom_call.1} parent=1 // pred_region
      %s148 = ssub.s32 16, 16
      %149 = vsyncadd [#allocation4], %s148
      %s151 = sshll.u32 [#allocation7], 4
      %s152 = int_to_ptr.vmem [resolvable:$true] %s151
      %154 = dma.vmem_to_hbm [thread:$0]  %s152, 16, %s2, [#allocation4]
    $region21: #{tpu_custom_call.1} parent=1 // pred_fallthru
      _
    // Predicated region
    $region22: #{tpu_custom_call.1} parent=1 // pred_check
      _
    $region23: #{tpu_custom_call.1} parent=1 // pred_check_branch
      %156 = sbr.rel (0) target = $region25
    $region24: #{tpu_custom_call.1} parent=1 // pred_region
      %s158 = ssub.s32 16, 16
      %159 = vsyncadd [#allocation9], %s158
      %s161 = sshll.u32 [#allocation8], 4
      %s162 = int_to_ptr.vmem [resolvable:$true] %s161
      %164 = dma.vmem_to_hbm [thread:$0]  %s162, 16, %s3, [#allocation9]
    $region25: #{tpu_custom_call.1} parent=1 // pred_fallthru
      _
    // Predicated region
    $region26: #{tpu_custom_call.1} parent=1 // pred_check
      _
    $region27: #{tpu_custom_call.1} parent=1 // pred_check_branch
      %166 = sbr.rel (0) target = $region29
    $region28: #{tpu_custom_call.1} parent=1 // pred_region
      %s168 = ssub.s32 16, 16
      %169 = vsyncadd [#allocation9], %s168
      %s171 = sshll.u32 [#allocation10], 4
      %s172 = int_to_ptr.vmem [resolvable:$true] %s171
      %174 = dma.vmem_to_hbm [thread:$0]  %s172, 16, %s4, [#allocation9]
    $region29: #{tpu_custom_call.1} parent=1 // pred_fallthru
      _
    // Predicated region
    $region30: #{tpu_custom_call.1} parent=1 // pred_check
      _
    $region31: #{tpu_custom_call.1} parent=1 // pred_check_branch
      %176 = sbr.rel (0) target = $region33
    $region32: #{tpu_custom_call.1} parent=1 // pred_region
      %177 = dma.done [#allocation4], 16
    $region33: #{tpu_custom_call.1} parent=1 // pred_fallthru
      _
    // Predicated region
    $region34: #{tpu_custom_call.1} parent=1 // pred_check
      _
    $region35: #{tpu_custom_call.1} parent=1 // pred_check_branch
      %179 = sbr.rel (0) target = $region37
    $region36: #{tpu_custom_call.1} parent=1 // pred_region
      %180 = dma.done [#allocation9], 16
    $region37: #{tpu_custom_call.1} parent=1 // pred_fallthru
      _
    // Predicated region
    $region38: #{tpu_custom_call.1} parent=1 // pred_check
      _
    $region39: #{tpu_custom_call.1} parent=1 // pred_check_branch
      %182 = sbr.rel (0) target = $region41
    $region40: #{tpu_custom_call.1} parent=1 // pred_region
      %183 = dma.done [#allocation9], 16
    $region41: #{tpu_custom_call.1} parent=1 // pred_fallthru
      _
    %184 = vsyncpa [#allocation3], 1
    %185 = vsyncpa [#allocation6], 1
    %186 = vsyncpa [#allocation4], 1
    %187 = vsyncpa [#allocation9], 1

</llo_original>
